<compile_context>
chip_gen: v6e
topology: v6e:2x2x1
jax: 0.10.0
libtpu: 0.0.40
codegen_flags: <defaults>
</compile_context>

<pallas_src>
import functools
import numpy as np
import jax
import jax.numpy as jnp
from jax.experimental import pallas as pl
from jax.experimental.pallas import tpu as pltpu

# -------------------- static configuration --------------------
NUM_CLASSES = 4
FOCAL_ALPHA = 0.25
FOCAL_GAMMA = 2.0          # module default; kernels hard-code the square
MASK_OUT_STRIDE = 4
NUM_FRAMES = 1             # nf = 1 for this synthetic setup
B, Q = 2, 8                # batch, queries
H_IMG = W_IMG = 32         # full-resolution gt mask size (divisible by 32)
H_S = W_S = H_IMG // MASK_OUT_STRIDE   # 8x8 predicted mask resolution
N_INST = 2                 # instances per batch element (static)
LOSSES = ['labels', 'cardinality', 'boxes', 'masks']


# ===================== Pallas kernels =====================

def _labels_card_kernel(logits_ref, onehot_ref, focal_ref, card_ref, *, alpha, q):
    """Fused classification focal loss (total) + cardinality counts.

    logits/onehot: [B*Q, C] (VMEM).  focal_ref: SMEM (1,), card_ref: SMEM (B,).
    """
    x = logits_ref[...].astype(jnp.float32)
    t = onehot_ref[...].astype(jnp.float32)
    p = jax.nn.sigmoid(x)
    # numerically stable BCE-with-logits
    ce = jnp.maximum(x, 0.0) - x * t + jnp.log1p(jnp.exp(-jnp.abs(x)))
    p_t = p * t + (1.0 - p) * (1.0 - t)
    a_t = alpha * t + (1.0 - alpha) * (1.0 - t)
    loss = a_t * ce * (1.0 - p_t) * (1.0 - p_t)          # gamma == 2
    focal_ref[0] = jnp.sum(loss)

    # cardinality: (argmax != C-1). torch.argmax takes the first max index,
    # so argmax != C-1  <=>  max(classes 0..C-2) >= last class.
    c = x.shape[-1]
    max_rest = jnp.max(x[:, : c - 1], axis=-1, keepdims=True)   # [B*Q, 1]
    last = x[:, c - 1:c]                                        # [B*Q, 1]
    ind = (max_rest >= last).astype(jnp.float32)
    b = x.shape[0] // q
    for bi in range(b):                                         # static, tiny
        card_ref[bi] = jnp.sum(ind[bi * q:(bi + 1) * q, :])


def _mask_focal_dice_kernel(src_ref, tgt_ref, focal_ref, dice_ref, *, alpha):
    """Fused mask focal-loss total + dice-loss total. src/tgt: [N, L] (VMEM)."""
    x = src_ref[...].astype(jnp.float32)
    t = tgt_ref[...].astype(jnp.float32)
    p = jax.nn.sigmoid(x)                                       # shared: focal + dice

    ce = jnp.maximum(x, 0.0) - x * t + jnp.log1p(jnp.exp(-jnp.abs(x)))
    p_t = p * t + (1.0 - p) * (1.0 - t)
    a_t = alpha * t + (1.0 - alpha) * (1.0 - t)
    focal = a_t * ce * (1.0 - p_t) * (1.0 - p_t)                # gamma == 2
    focal_ref[0] = jnp.sum(focal)

    num = 2.0 * jnp.sum(p * t, axis=1, keepdims=True)
    den = jnp.sum(p, axis=1, keepdims=True) + jnp.sum(t, axis=1, keepdims=True)
    dice = 1.0 - (num + 1.0) * pl.reciprocal(den + 1.0, approx=True)
    dice_ref[0] = jnp.sum(dice)


def _incoherent_kernel(x_ref, ahd_ref, awdT_ref, ahu_ref, awuT_ref, o_ref, *, thresh):
    """Fused get_incoherent_mask for a block of images.

    x: [n_blk, H, W] f32; interp matrices bf16; o: [n_blk, h_s, w_s] f32 (0/1).
    All intermediates stay in VMEM/vregs; matmuls use bf16 operands with f32
    accumulation (exact for 0/1 masks and 32<->8 interp weights).
    """
    ahd = ahd_ref[...]     # [h_s, H]  bf16
    awdT = awdT_ref[...]   # [W, w_s]  bf16
    ahu = ahu_ref[...]     # [H, h_s]  bf16
    awuT = awuT_ref[...]   # [w_s, W]  bf16
    for i in range(x_ref.shape[0]):                             # static, small
        x = x_ref[i]                                            # [H, W] f32
        xb = x.astype(jnp.bfloat16)
        small = jnp.dot(ahd, xb, preferred_element_type=jnp.float32)          # [h_s, W]
        small = jnp.dot(small.astype(jnp.bfloat16), awdT,
                        preferred_element_type=jnp.float32)                   # [h_s, w_s]
        rec = jnp.dot(ahu, small.astype(jnp.bfloat16),
                      preferred_element_type=jnp.float32)                     # [H, w_s]
        rec = jnp.dot(rec.astype(jnp.bfloat16), awuT,
                      preferred_element_type=jnp.float32)                     # [H, W]
        res = jnp.abs(x - rec)                                                # f32 VPU
        unc = jnp.dot(ahd, res.astype(jnp.bfloat16),
                      preferred_element_type=jnp.float32)                     # [h_s, W]
        unc = jnp.dot(unc.astype(jnp.bfloat16), awdT,
                      preferred_element_type=jnp.float32)                     # [h_s, w_s]
        o_ref[i] = (unc > thresh).astype(jnp.float32)


# ===================== Pallas wrappers =====================

def labels_card_call(logits2d, onehot2d, b, q):
    return pl.pallas_call(
        functools.partial(_labels_card_kernel, alpha=FOCAL_ALPHA, q=q),
        out_shape=(jax.ShapeDtypeStruct((1,), jnp.float32),
                   jax.ShapeDtypeStruct((b,), jnp.float32)),
        out_specs=(pl.BlockSpec(memory_space=pltpu.MemorySpace.SMEM),
                   pl.BlockSpec(memory_space=pltpu.MemorySpace.SMEM)),
    )(logits2d, onehot2d)


def mask_focal_dice_call(src_flat, tgt_flat):
    return pl.pallas_call(
        functools.partial(_mask_focal_dice_kernel, alpha=FOCAL_ALPHA),
        out_shape=(jax.ShapeDtypeStruct((1,), jnp.float32),
                   jax.ShapeDtypeStruct((1,), jnp.float32)),
        out_specs=(pl.BlockSpec(memory_space=pltpu.MemorySpace.SMEM),
                   pl.BlockSpec(memory_space=pltpu.MemorySpace.SMEM)),
    )(src_flat, tgt_flat)


def _interp_matrix(out_size, in_size):
    """PyTorch F.interpolate(mode='bilinear', align_corners=False) weight matrix."""
    i = np.arange(out_size, dtype=np.float64)
    scale = in_size / out_size
    src = (i + 0.5) * scale - 0.5
    src = np.maximum(src, 0.0)
    i0 = np.minimum(np.floor(src).astype(np.int64), in_size - 1)
    i1 = np.minimum(i0 + 1, in_size - 1)
    w1 = src - i0
    w0 = 1.0 - w1
    m = np.zeros((out_size, in_size), dtype=np.float32)
    np.add.at(m, (np.arange(out_size), i0), w0)
    np.add.at(m, (np.arange(out_size), i1), w1)
    return m


@functools.lru_cache(maxsize=None)
def _resize_mats(h, w, h_s, w_s):
    """Interp matrices built once and reused (hoisted per perf review)."""
    ahd = jnp.asarray(_interp_matrix(h_s, h), jnp.bfloat16)        # [h_s, h]
    awdT = jnp.asarray(_interp_matrix(w_s, w).T, jnp.bfloat16)     # [w, w_s]
    ahu = jnp.asarray(_interp_matrix(h, h_s), jnp.bfloat16)        # [h, h_s]
    awuT = jnp.asarray(_interp_matrix(w, w_s).T, jnp.bfloat16)     # [w_s, w]
    return ahd, awdT, ahu, awuT


def incoherent_masks(masks, h_s, w_s):
    """Batched, fully fused get_incoherent_mask.  masks: [n, H, W] -> [n, h_s, w_s]."""
    n, h, w = masks.shape
    ahd, awdT, ahu, awuT = _resize_mats(h, w, h_s, w_s)
    # Split the image batch over a 'parallel' grid axis so v7x's two TensorCores
    # each take half; on v5e/v6e this is just two cheap sequential steps.
    split = 2 if (n >= 2 and n % 2 == 0) else 1
    npb = n // split
    return pl.pallas_call(
        functools.partial(_incoherent_kernel, thresh=0.01),
        out_shape=jax.ShapeDtypeStruct((n, h_s, w_s), jnp.float32),
        grid=(split,),
        in_specs=[pl.BlockSpec((npb, h, w), lambda i: (i, 0, 0)),
                  pl.BlockSpec((h_s, h), lambda i: (0, 0)),
                  pl.BlockSpec((w, w_s), lambda i: (0, 0)),
                  pl.BlockSpec((h, h_s), lambda i: (0, 0)),
                  pl.BlockSpec((w_s, w), lambda i: (0, 0))],
        out_specs=pl.BlockSpec((npb, h_s, w_s), lambda i: (i, 0, 0)),
        compiler_params=pltpu.CompilerParams(dimension_semantics=("parallel",)),
    )(masks.astype(jnp.float32), ahd, awdT, ahu, awuT)


def compute_gt_masks_uncertain(outputs, targets):
    """Batched equivalent of the reference per-target get_incoherent_mask loop."""
    h_s = outputs['pred_masks_inc'].shape[-2]
    w_s = outputs['pred_masks_inc'].shape[-1]
    sizes = [t['masks'].shape[0] for t in targets]
    stacked = jnp.concatenate([t['masks'] for t in targets], axis=0)   # [sum n_i, H, W]
    unc = incoherent_masks(stacked, h_s, w_s)                          # one fused launch
    out, off = [], 0
    for s_i in sizes:
        out.append(unc[off:off + s_i][:, None])                        # [n_i, 1, h_s, w_s]
        off += s_i
    return out


# ===================== SetCriterion forward (JAX glue) =====================

def _get_src_permutation_idx(indices):
    batch_idx = jnp.concatenate(
        [jnp.full_like(src, i) for i, (src, _) in enumerate(indices)])
    src_idx = jnp.concatenate([src for src, _ in indices])
    return batch_idx, src_idx


def _get_tgt_permutation_idx(indices):
    batch_idx = jnp.concatenate(
        [jnp.full_like(tgt, i) for i, (_, tgt) in enumerate(indices)])
    tgt_idx = jnp.concatenate([tgt for _, tgt in indices])
    return batch_idx, tgt_idx


def labels_and_cardinality(outputs, targets, indices, num_boxes, log=True):
    """Fused: one Pallas launch computes both the focal total and card counts."""
    src_logits = outputs['pred_logits']                       # [B, Q, C]
    b, q, c = src_logits.shape
    batch_idx, src_idx = _get_src_permutation_idx(indices)
    target_classes_o = jnp.concatenate(
        [t['labels'][J] for t, (_, J) in zip(targets, indices)])
    target_classes = jnp.full((b, q), NUM_CLASSES, dtype=jnp.int32)
    target_classes = target_classes.at[batch_idx, src_idx].set(target_classes_o)
    onehot = jax.nn.one_hot(target_classes, NUM_CLASSES + 1,
                            dtype=src_logits.dtype)[..., :-1]  # [B, Q, C]

    focal_sum, card_pred = labels_card_call(src_logits.reshape(b * q, c),
                                            onehot.reshape(b * q, c), b, q)
    # sigmoid_focal_loss = loss.mean(1).sum()/num_boxes ; * Q  ==  total / num_boxes
    label_losses = {'loss_ce': focal_sum[0] / num_boxes}
    if log:
        matched_logits = src_logits[batch_idx, src_idx]       # [N, C]  (tiny; plain JAX)
        pred_cls = jnp.argmax(matched_logits, axis=-1)
        acc = jnp.mean((pred_cls == target_classes_o).astype(jnp.float32)) * 100.0
        label_losses['class_error'] = 100.0 - acc

    tgt_lengths = jnp.asarray([t['labels'].shape[0] for t in targets], jnp.float32)
    card_err = jnp.mean(jnp.abs(card_pred - tgt_lengths))     # F.l1_loss (mean)
    card_losses = {'cardinality_error': card_err}
    return label_losses, card_losses


def _box_cxcywh_to_xyxy(b):
    cx, cy, w, h = b[:, 0], b[:, 1], b[:, 2], b[:, 3]
    return jnp.stack([cx - 0.5 * w, cy - 0.5 * h, cx + 0.5 * w, cy + 0.5 * h], axis=-1)


def _giou_diag(src, tgt):
    """Matched GIoU (diag of generalized_box_iou). Reference assumes valid boxes
    (w,h > 0), so — like torchvision — no epsilon guards are added."""
    s = _box_cxcywh_to_xyxy(src)
    t = _box_cxcywh_to_xyxy(tgt)
    area_s = (s[:, 2] - s[:, 0]) * (s[:, 3] - s[:, 1])
    area_t = (t[:, 2] - t[:, 0]) * (t[:, 3] - t[:, 1])
    lt = jnp.maximum(s[:, :2], t[:, :2])
    rb = jnp.minimum(s[:, 2:], t[:, 2:])
    wh = jnp.clip(rb - lt, 0.0)
    inter = wh[:, 0] * wh[:, 1]
    union = area_s + area_t - inter
    iou = inter / union
    lt_c = jnp.minimum(s[:, :2], t[:, :2])
    rb_c = jnp.maximum(s[:, 2:], t[:, 2:])
    wh_c = jnp.clip(rb_c - lt_c, 0.0)
    area_c = wh_c[:, 0] * wh_c[:, 1]
    return iou - (area_c - union) / area_c


def loss_boxes(outputs, targets, indices, num_boxes):
    # Perf review: 4 boxes == 64 floats — a Pallas launch is pure overhead, keep in JAX.
    nf = NUM_FRAMES
    batch_idx, src_idx = _get_src_permutation_idx(indices)
    src_boxes = jnp.transpose(outputs['pred_boxes'], (0, 2, 1, 3))[batch_idx, src_idx]
    target_boxes = jnp.concatenate(
        [t['boxes'].reshape(-1, nf, 4)[J] for t, (_, J) in zip(targets, indices)],
        axis=0)                                               # [N, nf, 4]
    loss_bbox = jnp.sum(jnp.abs(src_boxes - target_boxes))
    loss_giou = jnp.float32(0.0)
    for f in range(nf):
        loss_giou = loss_giou + jnp.sum(1.0 - _giou_diag(src_boxes[:, f],
                                                         target_boxes[:, f]))
    return {'loss_bbox': loss_bbox / nf / num_boxes,
            'loss_giou': loss_giou / nf / num_boxes}


def loss_masks(outputs, targets, indices, num_boxes):
    src_masks = outputs['pred_masks']                         # [N, nf, h, w] matched order
    n, nf, hm, wm = src_masks.shape
    bs = len(targets)
    tgt_batch_idx, tgt_idx = _get_tgt_permutation_idx(indices)

    target_masks = jnp.stack([t['masks'] for t in targets])   # [B, n_inst, H, W]
    start = MASK_OUT_STRIDE // 2
    target_masks = target_masks[:, :, start::MASK_OUT_STRIDE, start::MASK_OUT_STRIDE]
    assert target_masks.shape[2] * MASK_OUT_STRIDE == H_IMG
    assert target_masks.shape[3] * MASK_OUT_STRIDE == W_IMG
    target_masks = target_masks.reshape(bs, -1, nf, hm, wm)
    target_masks = target_masks[tgt_batch_idx, tgt_idx]       # [N, nf, hm, wm]

    src_flat = src_masks.reshape(n, -1).astype(jnp.float32)
    tgt_flat = target_masks.reshape(n, -1).astype(jnp.float32)
    l = src_flat.shape[1]
    focal_sum, dice_sum = mask_focal_dice_call(src_flat, tgt_flat)   # one fused launch
    return {'loss_mask': focal_sum[0] / l / num_boxes,
            'loss_dice': dice_sum[0] / num_boxes}


def set_criterion_forward(outputs, targets, indices_list, valid_ratios):
    # Perf review: gt incoherent masks are only consumed by 'masks_incoherent*'
    # losses, which are not in LOSSES -> skip the whole resize pipeline.
    needs_incoherent = any(l.startswith('masks_incoherent') for l in LOSSES)
    gt_masks_uncertain = (compute_gt_masks_uncertain(outputs, targets)
                          if needs_incoherent else [])

    num_boxes = sum(int(t['labels'].shape[0]) for t in targets)
    num_boxes = max(float(num_boxes), 1.0)   # no distributed all-reduce here

    indices = indices_list[-1]
    losses = {}
    if ('labels' in LOSSES) or ('cardinality' in LOSSES):
        lab, card = labels_and_cardinality(outputs, targets, indices, num_boxes,
                                           log=('labels' in LOSSES))
        if 'labels' in LOSSES:
            losses.update(lab)
        if 'cardinality' in LOSSES:
            losses.update(card)
    if 'boxes' in LOSSES:
        losses.update(loss_boxes(outputs, targets, indices, num_boxes))
    if 'masks' in LOSSES:
        losses.update(loss_masks(outputs, targets, indices, num_boxes))
    # TODO(synk): aux_outputs loop, masks_refine and masks_incoherent(_L1) losses
    # depend on Hungarian matcher / nested-tensor padding; omitted in this synthetic setup.
    return losses, gt_masks_uncertain


# ===================== synthetic example =====================

def _rect_mask(h0, h1, w0, w1):
    r = jnp.arange(H_IMG)
    c = jnp.arange(W_IMG)
    return (((r[:, None] >= h0) & (r[:, None] < h1)) &
            ((c[None, :] >= w0) & (c[None, :] < w1))).astype(jnp.float32)


if __name__ == "__main__":
    key = jax.random.PRNGKey(0)
    k_logit, k_box, k_mask, k_inc, k_tbox = jax.random.split(key, 5)

    n_total = B * N_INST  # 4 matched instances

    outputs = {
        'pred_logits': jax.random.normal(k_logit, (B, Q, NUM_CLASSES), jnp.float32),
        # [B, nf, Q, 4] cxcywh in (0,1), w/h strictly positive
        'pred_boxes': jnp.concatenate([
            0.3 + 0.4 * jax.random.uniform(k_box, (B, NUM_FRAMES, Q, 2)),
            0.1 + 0.3 * jax.random.uniform(k_tbox, (B, NUM_FRAMES, Q, 2))], axis=-1),
        # matched-query mask logits, [N_total, nf, H_s, W_s]
        'pred_masks': jax.random.normal(k_mask, (n_total, NUM_FRAMES, H_S, W_S),
                                        jnp.float32),
        # [B, 1, H_s, W_s] incoherent-region logits
        'pred_masks_inc': jax.random.normal(k_inc, (B, 1, H_S, W_S), jnp.float32),
    }

    targets = [
        {'labels': jnp.array([0, 2], jnp.int32),
         'boxes': jnp.array([[0.30, 0.30, 0.25, 0.25],
                             [0.70, 0.60, 0.20, 0.30]], jnp.float32),
         'masks': jnp.stack([_rect_mask(4, 14, 4, 14), _rect_mask(18, 28, 16, 28)])},
        {'labels': jnp.array([1, 3], jnp.int32),
         'boxes': jnp.array([[0.50, 0.50, 0.40, 0.20],
                             [0.25, 0.75, 0.15, 0.15]], jnp.float32),
         'masks': jnp.stack([_rect_mask(10, 20, 6, 26), _rect_mask(20, 30, 2, 12)])},
    ]

    indices = [
        (jnp.array([0, 1], jnp.int32), jnp.array([1, 0], jnp.int32)),
        (jnp.array([3, 5], jnp.int32), jnp.array([0, 1], jnp.int32)),
    ]
    indices_list = [indices]
    valid_ratios = jnp.ones((B, 1, 2), jnp.float32)

    losses, _ = set_criterion_forward(outputs, targets, indices_list, valid_ratios)

    # The incoherent-mask pipeline is (correctly) gated off in the forward; run the
    # fused, batched kernel once here to exercise/validate it.
    gt_unc = compute_gt_masks_uncertain(outputs, targets)

    flat = jnp.stack(list(losses.values()))
    jax.block_until_ready(flat)
    for g in gt_unc:
        jax.block_until_ready(g)

    assert bool(jnp.all(jnp.isfinite(flat)))
    for g in gt_unc:
        assert bool(jnp.all(jnp.isfinite(g)))
    print("KERNEL_OK")
</pallas_src>

<mosaic_0001>
module attributes {stable_mosaic.version = 11 : i64} {
  func.func @_labels_card_kernel(%arg0: memref<16x4xf32, #tpu.memory_space<vmem>>, %arg1: memref<16x4xf32, #tpu.memory_space<vmem>>, %arg2: memref<1xf32, #tpu.memory_space<smem>>, %arg3: memref<2xf32, #tpu.memory_space<smem>>) attributes {dimension_semantics = [], scalar_prefetch = 0 : i64, scratch_operands = 0 : i64, tpu.core_type = #tpu.core_type<tc>} {
    %c0 = arith.constant 0 : index
    %c0_0 = arith.constant 0 : index
    %0 = vector.load %arg0[%c0, %c0_0] : memref<16x4xf32, #tpu.memory_space<vmem>>, vector<16x4xf32>
    %c0_1 = arith.constant 0 : index
    %c0_2 = arith.constant 0 : index
    %1 = vector.load %arg1[%c0_1, %c0_2] : memref<16x4xf32, #tpu.memory_space<vmem>>, vector<16x4xf32>
    %2 = arith.negf %0 : vector<16x4xf32>
    %3 = math.exp %2 : vector<16x4xf32>
    %cst = arith.constant 1.000000e+00 : f32
    %4 = vector.broadcast %cst : f32 to vector<16x4xf32>
    %5 = arith.addf %4, %3 : vector<16x4xf32>
    %6 = arith.divf %4, %5 : vector<16x4xf32>
    %cst_3 = arith.constant 0.000000e+00 : f32
    %7 = vector.broadcast %cst_3 : f32 to vector<16x4xf32>
    %8 = arith.maximumf %0, %7 : vector<16x4xf32>
    %9 = arith.mulf %0, %1 : vector<16x4xf32>
    %10 = arith.subf %8, %9 : vector<16x4xf32>
    %11 = math.absf %0 : vector<16x4xf32>
    %cst_4 = arith.constant 0.000000e+00 : f32
    %12 = vector.broadcast %cst_4 : f32 to vector<16x4xf32>
    %13 = arith.subf %12, %11 : vector<16x4xf32>
    %14 = math.exp %13 : vector<16x4xf32>
    %15 = math.log1p %14 : vector<16x4xf32>
    %16 = arith.addf %10, %15 : vector<16x4xf32>
    %17 = arith.mulf %6, %1 : vector<16x4xf32>
    %cst_5 = arith.constant 1.000000e+00 : f32
    %18 = vector.broadcast %cst_5 : f32 to vector<16x4xf32>
    %19 = arith.subf %18, %6 : vector<16x4xf32>
    %cst_6 = arith.constant 1.000000e+00 : f32
    %20 = vector.broadcast %cst_6 : f32 to vector<16x4xf32>
    %21 = arith.subf %20, %1 : vector<16x4xf32>
    %22 = arith.mulf %19, %21 : vector<16x4xf32>
    %23 = arith.addf %17, %22 : vector<16x4xf32>
    %cst_7 = arith.constant 2.500000e-01 : f32
    %24 = vector.broadcast %cst_7 : f32 to vector<16x4xf32>
    %25 = arith.mulf %24, %1 : vector<16x4xf32>
    %cst_8 = arith.constant 1.000000e+00 : f32
    %26 = vector.broadcast %cst_8 : f32 to vector<16x4xf32>
    %27 = arith.subf %26, %1 : vector<16x4xf32>
    %cst_9 = arith.constant 7.500000e-01 : f32
    %28 = vector.broadcast %cst_9 : f32 to vector<16x4xf32>
    %29 = arith.mulf %28, %27 : vector<16x4xf32>
    %30 = arith.addf %25, %29 : vector<16x4xf32>
    %31 = arith.mulf %30, %16 : vector<16x4xf32>
    %cst_10 = arith.constant 1.000000e+00 : f32
    %32 = vector.broadcast %cst_10 : f32 to vector<16x4xf32>
    %33 = arith.subf %32, %23 : vector<16x4xf32>
    %34 = arith.mulf %31, %33 : vector<16x4xf32>
    %cst_11 = arith.constant 1.000000e+00 : f32
    %35 = vector.broadcast %cst_11 : f32 to vector<16x4xf32>
    %36 = arith.subf %35, %23 : vector<16x4xf32>
    %37 = arith.mulf %34, %36 : vector<16x4xf32>
    %38 = vector.shape_cast %37 : vector<16x4xf32> to vector<1x16x4xf32>
    %cst_12 = arith.constant dense<0.000000e+00> : vector<1xf32>
    %39 = vector.multi_reduction <add>, %38, %cst_12 [1, 2] : vector<1x16x4xf32> to vector<1xf32>
    %40 = vector.shape_cast %39 : vector<1xf32> to vector<1x1x1xf32>
    %41 = vector.extract %40[0, 0, 0] : f32 from vector<1x1x1xf32>
    %c0_13 = arith.constant 0 : index
    %42 = memref.load %arg2[%c0_13] : memref<1xf32, #tpu.memory_space<smem>>
    memref.store %41, %arg2[%c0_13] : memref<1xf32, #tpu.memory_space<smem>>
    %43 = vector.extract_strided_slice %0 {offsets = [0, 0], sizes = [16, 3], strides = [1, 1]} : vector<16x4xf32> to vector<16x3xf32>
    %cst_14 = arith.constant dense<0xFF800000> : vector<16xf32>
    %44 = vector.multi_reduction <maximumf>, %43, %cst_14 [1] : vector<16x3xf32> to vector<16xf32>
    %45 = vector.shape_cast %44 : vector<16xf32> to vector<16x1xf32>
    %46 = vector.extract_strided_slice %0 {offsets = [0, 3], sizes = [16, 1], strides = [1, 1]} : vector<16x4xf32> to vector<16x1xf32>
    %47 = arith.cmpf oge, %45, %46 : vector<16x1xf32>
    %48 = arith.extui %47 : vector<16x1xi1> to vector<16x1xi32>
    %49 = arith.sitofp %48 : vector<16x1xi32> to vector<16x1xf32>
    %50 = vector.extract_strided_slice %49 {offsets = [0, 0], sizes = [8, 1], strides = [1, 1]} : vector<16x1xf32> to vector<8x1xf32>
    %51 = vector.shape_cast %50 : vector<8x1xf32> to vector<1x8x1xf32>
    %cst_15 = arith.constant dense<0.000000e+00> : vector<1xf32>
    %52 = vector.multi_reduction <add>, %51, %cst_15 [1, 2] : vector<1x8x1xf32> to vector<1xf32>
    %53 = vector.shape_cast %52 : vector<1xf32> to vector<1x1x1xf32>
    %54 = vector.extract %53[0, 0, 0] : f32 from vector<1x1x1xf32>
    %c0_16 = arith.constant 0 : index
    %55 = memref.load %arg3[%c0_16] : memref<2xf32, #tpu.memory_space<smem>>
    memref.store %54, %arg3[%c0_16] : memref<2xf32, #tpu.memory_space<smem>>
    %56 = vector.extract_strided_slice %49 {offsets = [8, 0], sizes = [8, 1], strides = [1, 1]} : vector<16x1xf32> to vector<8x1xf32>
    %57 = vector.shape_cast %56 : vector<8x1xf32> to vector<1x8x1xf32>
    %cst_17 = arith.constant dense<0.000000e+00> : vector<1xf32>
    %58 = vector.multi_reduction <add>, %57, %cst_17 [1, 2] : vector<1x8x1xf32> to vector<1xf32>
    %59 = vector.shape_cast %58 : vector<1xf32> to vector<1x1x1xf32>
    %60 = vector.extract %59[0, 0, 0] : f32 from vector<1x1x1xf32>
    %c1 = arith.constant 1 : index
    %61 = memref.load %arg3[%c1] : memref<2xf32, #tpu.memory_space<smem>>
    memref.store %60, %arg3[%c1] : memref<2xf32, #tpu.memory_space<smem>>
    return
  }
}

</mosaic_0001>

<llo_original>
// kernel: tpu_custom_call.1
$region0: #{tpu_custom_call.1}
  #allocation0 [shape = 'u32[]', space=smem, size = 0x4, offset = 0x4, fixed_abs, tag = 'smem constant byte address 0x4 - core index']
  #allocation1 [shape = 'u32[144,128]{1,0:T(1,128)}', space=vmem, size = 0x12000, scoped, tag = 'internal scratch']
  %s0 = inlined_call_operand.vmem [shape: f32[16,4], index: 0, kind: input, shape index: {}]
  %s1 = inlined_call_operand.vmem [shape: f32[16,4], index: 1, kind: input, shape index: {}]
  %s2 = inlined_call_operand.hbm [shape: f32[1], index: 2, kind: output, shape index: {0}]
  %s3 = inlined_call_operand.hbm [shape: f32[2], index: 3, kind: output, shape index: {1}]
  %4 = xla_tuple %s2, %s3
  %s5 = sld [smem:[#allocation0]]
  $region26: #{tpu_custom_call.1} parent=0
    _
  %s7 = ssub.s32 1, %s5
  %s8 = scalar_select 0, %s7, %s5
  $region1: #{tpu_custom_call.1} parent=0
    #allocation2 [shape = 'u8[512]{0}', space=smem, size = 0x200, scoped, tag = 'output window, operand 0, single buffered']
    #allocation3 [shape = 's32[1]{0}', space=sflag, size = 0x4, scoped, tag = 'scoped memory for tpu_custom_call.1']
    #allocation4 [shape = 'u8[512]{0}', space=smem, size = 0x200, scoped, tag = 'output window, operand 1, single buffered']
    #allocation5 [shape = 's32[1]{0}', space=sflag, size = 0x4, scoped, tag = 'scoped memory for tpu_custom_call.1']
    %9 = vsyncpa [#allocation3], 0
    %10 = vsyncpa [#allocation5], 0
    // Predicated region
    $region2: #{tpu_custom_call.1} parent=1 // pred_check
      _
    $region3: #{tpu_custom_call.1} parent=1 // pred_check_branch
      %12 = sbr.rel (0) target = $region5
    $region4: #{tpu_custom_call.1} parent=1 // pred_region
      _
    $region5: #{tpu_custom_call.1} parent=1 // pred_fallthru
      _
    // Predicated region
    $region6: #{tpu_custom_call.1} parent=1 // pred_check
      _
    $region7: #{tpu_custom_call.1} parent=1 // pred_check_branch
      %14 = sbr.rel (0) target = $region9
    $region8: #{tpu_custom_call.1} parent=1 // pred_region
      _
    $region9: #{tpu_custom_call.1} parent=1 // pred_fallthru
      _
    %v15 = vld [vmem:[%s0] sm:$0xff]
    %v16 = vld [vmem:[%s0 + $0x8] sm:$0xff]
    %v17 = vld [vmem:[%s1] sm:$0xff]
    %v18 = vld [vmem:[%s1 + $0x8] sm:$0xff]
    %v19 = vxor.u32 %v15, 2147483648
    %v20 = vxor.u32 %v16, 2147483648
    %v21 = vmul.f32 %v19, 1.442695
    %v22 = vpow.pop %v21
    %v23 = vmul.f32 %v20, 1.442695
    %v24 = vpow.pop %v23
    %v25 = vadd.f32 %v22, 1.0
    %v26 = vadd.f32 %v24, 1.0
    %v27 = vrcp.pop %v25
    %v28 = vmul.f32 1.0, %v27
    %v29 = vrcp.pop %v26
    %v30 = vmul.f32 1.0, %v29
    %v31 = vmax.f32 %v15, 0.0
    %v32 = vmax.f32 %v16, 0.0
    %v33 = vmul.f32 %v15, %v17
    %v34 = vmul.f32 %v16, %v18
    %v35 = vsub.f32 %v31, %v33
    %v36 = vsub.f32 %v32, %v34
    %v37 = vand.u32 2147483647, %v15
    %v38 = vand.u32 2147483647, %v16
    %v39 = vsub.f32 0.0, %v37
    %v40 = vsub.f32 0.0, %v38
    %v41 = vmul.f32 %v39, 1.442695
    %v42 = vpow.pop %v41
    %v43 = vmul.f32 %v40, 1.442695
    %v44 = vpow.pop %v43
    %v45 = vadd.f32 %v42, 1.0
    %v46 = vlog2.pop %v45
    %v47 = vmul.f32 %v46, 0.6931472
    %v48 = vmul.f32 -0.5, %v42
    %v49 = vadd.f32 %v48, 1.0
    %v50 = vmul.f32 %v49, %v42
    %v51 = vand.u32 2147483647, %v42
    %vm52 = vcmp.lt.f32.partialorder %v51, 0.0004427343
    %v53 = vsel %vm52, %v50, %v47
    %v54 = vadd.f32 %v44, 1.0
    %v55 = vlog2.pop %v54
    %v56 = vmul.f32 %v55, 0.6931472
    %v57 = vmul.f32 -0.5, %v44
    %v58 = vadd.f32 %v57, 1.0
    %v59 = vmul.f32 %v58, %v44
    %v60 = vand.u32 2147483647, %v44
    %vm61 = vcmp.lt.f32.partialorder %v60, 0.0004427343
    %v62 = vsel %vm61, %v59, %v56
    %v63 = vadd.f32 %v35, %v53
    %v64 = vadd.f32 %v36, %v62
    %v65 = vmul.f32 %v28, %v17
    %v66 = vmul.f32 %v30, %v18
    %v67 = vsub.f32 1.0, %v28
    %v68 = vsub.f32 1.0, %v30
    %v69 = vsub.f32 1.0, %v17
    %v70 = vsub.f32 1.0, %v18
    %v71 = vmul.f32 %v67, %v69
    %v72 = vmul.f32 %v68, %v70
    %v73 = vadd.f32 %v65, %v71
    %v74 = vadd.f32 %v66, %v72
    %v75 = vmul.f32 %v17, 0.25
    %v76 = vmul.f32 %v18, 0.25
    %v77 = vmul.f32 %v69, 0.75
    %v78 = vmul.f32 %v70, 0.75
    %v79 = vadd.f32 %v75, %v77
    %v80 = vadd.f32 %v76, %v78
    %v81 = vmul.f32 %v79, %v63
    %v82 = vmul.f32 %v80, %v64
    %v83 = vsub.f32 1.0, %v73
    %v84 = vsub.f32 1.0, %v74
    %v85 = vmul.f32 %v81, %v83
    %v86 = vmul.f32 %v82, %v84
    %v87 = vmul.f32 %v85, %v83
    %v88 = vmul.f32 %v86, %v84
    %vm89 = vcmask 31744
    %v90 = vsel %vm89, %v87, 0.0
    %v91 = vsel %vm89, %v88, 0.0
    %v92 = vadd.f32 %v90, %v91
    %93 = vadd.xlane.f32.xlu0 %v92
    %v94 = vpop.xlane.xlu0 %93
    %v95 = vrot.slane %v94, 4
    %v96 = vadd.f32 %v94, %v95
    %v97 = vrot.slane %v96, 2
    %v98 = vadd.f32 %v96, %v97
    %v99 = vrot.slane %v98, 1
    %v100 = vadd.f32 %v98, %v99
    %s101 = vtos %v100
    %s102 = scalar_lea.smem [#allocation2], 0
    %103 = sst [smem:[%s102]] %s101
    %vm104 = vcmask 23552
    %v105 = vsel %vm104, %v15, -inf
    %106 = vmax.xlane.f32.xlu0 %v105
    %v107 = vpop.xlane.xlu0 %106
    %v108 = vsel %vm104, %v16, -inf
    %109 = vmax.xlane.f32.xlu0 %v108
    %v110 = vpop.xlane.xlu0 %109
    %vm111 = vcmp.ge.f32.partialorder %v107, %v15
    %vm112 = vcmp.ge.f32.partialorder %v110, %v16
    %v113 = vsel %vm111, 1, 0
    %v114 = vsel %vm112, 1, 0
    %v115 = vcvt.s32.f32 %v113
    %v116 = vcvt.s32.f32 %v114
    %118 = vrot.lane.b32.xlu0 %v115, 125
    %v119 = vpop.permute.xlu0 %118
    %vm121 = vcmask 7168
    %v122 = vsel %vm121, %v119, 0.0
    %123 = vadd.xlane.f32.xlu0 %v122
    %v124 = vpop.xlane.xlu0 %123
    %v125 = vrot.slane %v124, 4
    %v126 = vadd.f32 %v124, %v125
    %v127 = vrot.slane %v126, 2
    %v128 = vadd.f32 %v126, %v127
    %v129 = vrot.slane %v128, 1
    %v130 = vadd.f32 %v128, %v129
    %s131 = vtos %v130
    %s132 = scalar_lea.smem [#allocation4], 0
    %133 = sst [smem:[%s132]] %s131
    %135 = vrot.lane.b32.xlu0 %v116, 125
    %v136 = vpop.permute.xlu0 %135
    %v138 = vsel %vm121, %v136, 0.0
    %139 = vadd.xlane.f32.xlu0 %v138
    %v140 = vpop.xlane.xlu0 %139
    %v141 = vrot.slane %v140, 4
    %v142 = vadd.f32 %v140, %v141
    %v143 = vrot.slane %v142, 2
    %v144 = vadd.f32 %v142, %v143
    %v145 = vrot.slane %v144, 1
    %v146 = vadd.f32 %v144, %v145
    %s147 = vtos %v146
    %s148 = scalar_lea.smem [#allocation4], 1
    %149 = sst [smem:[%s148]] %s147
    // Predicated region
    $region10: #{tpu_custom_call.1} parent=1 // pred_check
      _
    $region11: #{tpu_custom_call.1} parent=1 // pred_check_branch
      %151 = sbr.rel (0) target = $region13
    $region12: #{tpu_custom_call.1} parent=1 // pred_region
      %s153 = ssub.s32 16, 16
      %154 = vsyncadd [#allocation3], %s153
      %157 = dma.smem_to_hbm [#allocation2], 16, %s2, [#allocation3]
    $region13: #{tpu_custom_call.1} parent=1 // pred_fallthru
      _
    // Predicated region
    $region14: #{tpu_custom_call.1} parent=1 // pred_check
      _
    $region15: #{tpu_custom_call.1} parent=1 // pred_check_branch
      %159 = sbr.rel (0) target = $region17
    $region16: #{tpu_custom_call.1} parent=1 // pred_region
      %s161 = ssub.s32 16, 16
      %162 = vsyncadd [#allocation5], %s161
      %165 = dma.smem_to_hbm [#allocation4], 16, %s3, [#allocation5]
    $region17: #{tpu_custom_call.1} parent=1 // pred_fallthru
      _
    // Predicated region
    $region18: #{tpu_custom_call.1} parent=1 // pred_check
      _
    $region19: #{tpu_custom_call.1} parent=1 // pred_check_branch
      %167 = sbr.rel (0) target = $region21
    $region20: #{tpu_custom_call.1} parent=1 // pred_region
      %168 = dma.done [#allocation3], 16
    $region21: #{tpu_custom_call.1} parent=1 // pred_fallthru
      _
    // Predicated region
    $region22: #{tpu_custom_call.1} parent=1 // pred_check
      _
    $region23: #{tpu_custom_call.1} parent=1 // pred_check_branch
      %170 = sbr.rel (0) target = $region25
    $region24: #{tpu_custom_call.1} parent=1 // pred_region
      %171 = dma.done [#allocation5], 16
    $region25: #{tpu_custom_call.1} parent=1 // pred_fallthru
      _
    %172 = sfence
    %173 = vsyncpa [#allocation3], 1
    %174 = vsyncpa [#allocation5], 1

</llo_original>
